<compile_context>
chip_gen: v7x
topology: tpu7x:2x2x1
jax: 0.10.0
libtpu: 0.0.40
codegen_flags: <defaults>
</compile_context>

<pallas_src>
import functools

import jax
import jax.numpy as jnp
from jax import lax
from jax.experimental import pallas as pl
from jax.experimental.pallas import tpu as pltpu


def _multi_soft_target_kernel(s_ref, t_ref, out_ref, *, inv_temp, total_rows,
                              block_rows):
    """One grid step = one (block_rows, C) tile of the flattened (B*M, C)
    logits. Writes this tile's summed per-row KL into its own (1,1) SMEM
    output element (no cross-iteration accumulation -> parallel grid)."""
    tile = pl.program_id(0)

    # Fold 1/T into a multiply instead of per-element divides.
    s = s_ref[...].astype(jnp.float32) * inv_temp
    t = t_ref[...].astype(jnp.float32) * inv_temp

    # Mask rows beyond the real B*M extent (garbage in the last partial tile).
    # With s == t == 0 the per-row KL is exactly 0, so masked rows add nothing.
    row_ids = tile * block_rows + lax.broadcasted_iota(
        jnp.int32, (block_rows, 1), 0)
    valid = row_ids < total_rows
    s = jnp.where(valid, s, 0.0)
    t = jnp.where(valid, t, 0.0)

    # log_softmax(student / T) along the class (lane) axis.
    s_shift = s - jnp.max(s, axis=-1, keepdims=True)
    log_p_s = s_shift - jnp.log(jnp.sum(jnp.exp(s_shift), axis=-1,
                                        keepdims=True))

    # Teacher: un-normalized exp + reciprocal; p_t is never materialized.
    t_shift = t - jnp.max(t, axis=-1, keepdims=True)
    t_exp = jnp.exp(t_shift)
    t_sum = jnp.sum(t_exp, axis=-1, keepdims=True)
    log_p_t = t_shift - jnp.log(t_sum)

    # per-row KL = (1/t_sum) * sum_c t_exp * (log p_t - log p_s)
    kl_rows = jnp.sum(t_exp * (log_p_t - log_p_s), axis=-1, keepdims=True) \
        * pl.reciprocal(t_sum, approx=False)

    out_ref[0, 0] = jnp.sum(kl_rows)


def multi_soft_target(out_s_multi, out_t_multi, T):
    """out_s_multi, out_t_multi: (B, M, C) float arrays (f32 or bf16).
    Returns the scalar MultiSoftTarget loss."""
    B, M, C = out_s_multi.shape
    assert out_t_multi.shape == (B, M, C)
    total_rows = B * M

    # Free contiguous reshape; no transpose, no extra HBM copy.
    s = out_s_multi.reshape(total_rows, C)
    t = out_t_multi.reshape(total_rows, C)

    # Minimum sublane count for the (8,128) tiling rule depends on packing:
    # f32 -> 8 rows, bf16 -> 16 rows, int8 -> 32 rows.
    itemsize = min(jnp.dtype(s.dtype).itemsize, jnp.dtype(t.dtype).itemsize)
    min_rows = max(8, 32 // itemsize)

    # Row-tile size: big enough to amortize ~600-cycle per-step overhead,
    # small enough that double-buffered inputs + f32 temps stay well inside
    # v7x's 64 MiB VMEM (we budget ~4 MiB per input block in f32 terms).
    budget_bytes = 4 * 1024 * 1024
    cap = max(min_rows, (budget_bytes // (C * 4)) // min_rows * min_rows)
    cap = min(cap, 1024)
    if total_rows <= cap:
        block_rows = total_rows  # full-extent block is always a legal shape
    else:
        block_rows = cap
    num_tiles = pl.cdiv(total_rows, block_rows)
    # TODO(synk): for very large C where even (min_rows, C) f32 won't fit in
    # VMEM, add a class-axis grid with an online-softmax accumulator.

    kernel = functools.partial(
        _multi_soft_target_kernel,
        inv_temp=1.0 / float(T),
        total_rows=total_rows,
        block_rows=block_rows,
    )

    partials = pl.pallas_call(
        kernel,
        out_shape=jax.ShapeDtypeStruct((num_tiles, 1), jnp.float32),
        grid=(num_tiles,),
        in_specs=[
            pl.BlockSpec((block_rows, C), lambda i: (i, 0)),
            pl.BlockSpec((block_rows, C), lambda i: (i, 0)),
        ],
        out_specs=pl.BlockSpec((1, 1), lambda i: (i, 0),
                               memory_space=pltpu.SMEM),
        compiler_params=pltpu.CompilerParams(
            dimension_semantics=("parallel",),
            vmem_limit_bytes=48 * 1024 * 1024,
        ),
    )(s, t)

    scale = (float(T) * float(T)) / float(total_rows)
    return jnp.sum(partials) * scale


def _reference(out_s_multi, out_t_multi, T):
    """Pure-JAX reference matching the PyTorch loop exactly."""
    B, M, C = out_s_multi.shape
    total = jnp.float32(0.0)
    for i in range(M):
        s = out_s_multi[:, i, :].astype(jnp.float32) / T
        t = out_t_multi[:, i, :].astype(jnp.float32) / T
        log_p_s = jax.nn.log_softmax(s, axis=1)
        p_t = jax.nn.softmax(t, axis=1)
        log_p_t = jax.nn.log_softmax(t, axis=1)
        kl = jnp.sum(p_t * (log_p_t - log_p_s)) / B
        total = total + kl * T * T
    return total / M


if __name__ == "__main__":
    key = jax.random.PRNGKey(0)
    k1, k2 = jax.random.split(key)

    B, M, C = 2, 4, 16  # batch, number of heads, number of classes
    T = 2.0

    out_s = jax.random.normal(k1, (B, M, C), dtype=jnp.float32)
    out_t = jax.random.normal(k2, (B, M, C), dtype=jnp.float32)

    loss = multi_soft_target(out_s, out_t, T)
    jax.block_until_ready(loss)

    ref = _reference(out_s, out_t, T)
    assert jnp.allclose(loss, ref, rtol=1e-5, atol=1e-6), (loss, ref)

    print("KERNEL_OK")
</pallas_src>

<mosaic_0001>
module attributes {stable_mosaic.version = 11 : i64} {
  func.func @_multi_soft_target_kernel(%arg0: i32, %arg1: memref<8x16xf32, #tpu.memory_space<vmem>>, %arg2: memref<8x16xf32, #tpu.memory_space<vmem>>, %arg3: memref<1x1xf32, #tpu.memory_space<smem>>) attributes {dimension_semantics = [#tpu.dimension_semantics<parallel>], iteration_bounds = array<i64: 1>, scalar_prefetch = 0 : i64, scratch_operands = 0 : i64, tpu.core_type = #tpu.core_type<tc>, window_params = [{transform_indices = @transform_0, window_bounds = array<i64: 8, 16>}, {transform_indices = @transform_1, window_bounds = array<i64: 8, 16>}, {transform_indices = @transform_2, window_bounds = array<i64: 1, 1>}]} {
    %c0 = arith.constant 0 : index
    %c0_0 = arith.constant 0 : index
    %0 = vector.load %arg1[%c0, %c0_0] : memref<8x16xf32, #tpu.memory_space<vmem>>, vector<8x16xf32>
    %cst = arith.constant 5.000000e-01 : f32
    %1 = vector.broadcast %cst : f32 to vector<8x16xf32>
    %2 = arith.mulf %0, %1 : vector<8x16xf32>
    %c0_1 = arith.constant 0 : index
    %c0_2 = arith.constant 0 : index
    %3 = vector.load %arg2[%c0_1, %c0_2] : memref<8x16xf32, #tpu.memory_space<vmem>>, vector<8x16xf32>
    %cst_3 = arith.constant 5.000000e-01 : f32
    %4 = vector.broadcast %cst_3 : f32 to vector<8x16xf32>
    %5 = arith.mulf %3, %4 : vector<8x16xf32>
    %c8_i32 = arith.constant 8 : i32
    %6 = arith.muli %arg0, %c8_i32 : i32
    %7 = tpu.iota {dimensions = array<i32: 0>} : vector<8x1xi32>
    %8 = vector.broadcast %6 : i32 to vector<8x1xi32>
    %9 = arith.addi %8, %7 : vector<8x1xi32>
    %c8_i32_4 = arith.constant 8 : i32
    %10 = vector.broadcast %c8_i32_4 : i32 to vector<8x1xi32>
    %11 = arith.cmpi slt, %9, %10 : vector<8x1xi32>
    %cst_5 = arith.constant 0.000000e+00 : f32
    %12 = vector.shape_cast %11 : vector<8x1xi1> to vector<8x1xi1>
    %13 = vector.broadcast %12 : vector<8x1xi1> to vector<8x16xi1>
    %14 = vector.broadcast %cst_5 : f32 to vector<8x16xf32>
    %15 = arith.select %13, %2, %14 : vector<8x16xi1>, vector<8x16xf32>
    %cst_6 = arith.constant 0.000000e+00 : f32
    %16 = vector.shape_cast %11 : vector<8x1xi1> to vector<8x1xi1>
    %17 = vector.broadcast %16 : vector<8x1xi1> to vector<8x16xi1>
    %18 = vector.broadcast %cst_6 : f32 to vector<8x16xf32>
    %19 = arith.select %17, %5, %18 : vector<8x16xi1>, vector<8x16xf32>
    %cst_7 = arith.constant dense<0xFF800000> : vector<8xf32>
    %20 = vector.multi_reduction <maximumf>, %15, %cst_7 [1] : vector<8x16xf32> to vector<8xf32>
    %21 = vector.shape_cast %20 : vector<8xf32> to vector<8x1xf32>
    %22 = vector.broadcast %21 : vector<8x1xf32> to vector<8x16xf32>
    %23 = arith.subf %15, %22 : vector<8x16xf32>
    %24 = math.exp %23 : vector<8x16xf32>
    %cst_8 = arith.constant dense<0.000000e+00> : vector<8xf32>
    %25 = vector.multi_reduction <add>, %24, %cst_8 [1] : vector<8x16xf32> to vector<8xf32>
    %26 = vector.shape_cast %25 : vector<8xf32> to vector<8x1xf32>
    %27 = math.log %26 : vector<8x1xf32>
    %28 = vector.broadcast %27 : vector<8x1xf32> to vector<8x16xf32>
    %29 = arith.subf %23, %28 : vector<8x16xf32>
    %cst_9 = arith.constant dense<0xFF800000> : vector<8xf32>
    %30 = vector.multi_reduction <maximumf>, %19, %cst_9 [1] : vector<8x16xf32> to vector<8xf32>
    %31 = vector.shape_cast %30 : vector<8xf32> to vector<8x1xf32>
    %32 = vector.broadcast %31 : vector<8x1xf32> to vector<8x16xf32>
    %33 = arith.subf %19, %32 : vector<8x16xf32>
    %34 = math.exp %33 : vector<8x16xf32>
    %cst_10 = arith.constant dense<0.000000e+00> : vector<8xf32>
    %35 = vector.multi_reduction <add>, %34, %cst_10 [1] : vector<8x16xf32> to vector<8xf32>
    %36 = vector.shape_cast %35 : vector<8xf32> to vector<8x1xf32>
    %37 = math.log %36 : vector<8x1xf32>
    %38 = vector.broadcast %37 : vector<8x1xf32> to vector<8x16xf32>
    %39 = arith.subf %33, %38 : vector<8x16xf32>
    %40 = arith.subf %39, %29 : vector<8x16xf32>
    %41 = arith.mulf %34, %40 : vector<8x16xf32>
    %cst_11 = arith.constant dense<0.000000e+00> : vector<8xf32>
    %42 = vector.multi_reduction <add>, %41, %cst_11 [1] : vector<8x16xf32> to vector<8xf32>
    %43 = vector.shape_cast %42 : vector<8xf32> to vector<8x1xf32>
    %44 = tpu.reciprocal %36 : vector<8x1xf32> -> vector<8x1xf32>
    %45 = arith.mulf %43, %44 : vector<8x1xf32>
    %46 = vector.shape_cast %45 : vector<8x1xf32> to vector<1x8x1xf32>
    %cst_12 = arith.constant dense<0.000000e+00> : vector<1xf32>
    %47 = vector.multi_reduction <add>, %46, %cst_12 [1, 2] : vector<1x8x1xf32> to vector<1xf32>
    %48 = vector.shape_cast %47 : vector<1xf32> to vector<1x1x1xf32>
    %49 = vector.extract %48[0, 0, 0] : f32 from vector<1x1x1xf32>
    %c0_13 = arith.constant 0 : index
    %c0_14 = arith.constant 0 : index
    %50 = memref.load %arg3[%c0_13, %c0_14] : memref<1x1xf32, #tpu.memory_space<smem>>
    memref.store %49, %arg3[%c0_13, %c0_14] : memref<1x1xf32, #tpu.memory_space<smem>>
    return
  }
  func.func @transform_0(%arg0: i32) -> (i32, i32) {
    %c0_i32 = arith.constant 0 : i32
    %c0_i32_0 = arith.constant 0 : i32
    return %arg0, %c0_i32 : i32, i32
  }
  func.func @transform_1(%arg0: i32) -> (i32, i32) {
    %c0_i32 = arith.constant 0 : i32
    %c0_i32_0 = arith.constant 0 : i32
    return %arg0, %c0_i32 : i32, i32
  }
  func.func @transform_2(%arg0: i32) -> (i32, i32) {
    %c0_i32 = arith.constant 0 : i32
    %c0_i32_0 = arith.constant 0 : i32
    return %arg0, %c0_i32 : i32, i32
  }
}

</mosaic_0001>

<llo_original>
// kernel: tpu_custom_call.1
$region0: #{tpu_custom_call.1}
  #allocation0 [shape = 'u32[]', space=smem, size = 0x4, offset = 0x4, fixed_abs, tag = 'smem constant byte address 0x4 - core index']
  #allocation1 [shape = 'u32[144,128]{1,0:T(1,128)}', space=vmem, size = 0x12000, scoped, tag = 'internal scratch']
  %s0 = inlined_call_operand.hbm [shape: f32[8,16], index: 0, kind: input, shape index: {}]
  %s1 = inlined_call_operand.hbm [shape: f32[8,16], index: 1, kind: input, shape index: {}]
  %s2 = inlined_call_operand.hbm [shape: f32[1,1], index: 2, kind: output, shape index: {}]
  %s3 = sld [smem:[#allocation0]]
  $region26: #{tpu_custom_call.1} parent=0
    _
  %s5 = ssub.s32 1, %s3
  %s6 = scalar_select 0, %s5, %s3
  $region1: #{tpu_custom_call.1} parent=0
    #allocation2 [shape = 'u8[4096]{0}', space=vmem, size = 0x1000, scoped, tag = 'input window, operand 0, single buffered']
    #allocation3 [shape = 's32[1]{0}', space=sflag, size = 0x4, scoped, tag = 'scoped memory for tpu_custom_call.1']
    #allocation4 [shape = 's32[1]{0}', space=sflag, size = 0x4, scoped, tag = 'scoped memory for tpu_custom_call.1']
    #allocation5 [shape = 'u8[4096]{0}', space=vmem, size = 0x1000, scoped, tag = 'input window, operand 1, single buffered']
    #allocation6 [shape = 's32[1]{0}', space=sflag, size = 0x4, scoped, tag = 'scoped memory for tpu_custom_call.1']
    #allocation7 [shape = 'u8[512]{0}', space=smem, size = 0x200, scoped, tag = 'output window, operand 0, single buffered']
    %7 = vsyncpa [#allocation3], 0
    %8 = vsyncpa [#allocation6], 0
    %9 = vsyncpa [#allocation4], 0
    // Predicated region
    $region2: #{tpu_custom_call.1} parent=1 // pred_check
      _
    $region3: #{tpu_custom_call.1} parent=1 // pred_check_branch
      %11 = sbr.rel (0) target = $region5
    $region4: #{tpu_custom_call.1} parent=1 // pred_region
      %s13 = ssub.s32 128, 128
      %14 = vsyncadd [#allocation3], %s13
      %s16 = sshll.u32 [#allocation2], 4
      %s17 = int_to_ptr.vmem [resolvable:$true] %s16
      %19 = dma.hbm_to_vmem [thread:$0]  %s0, 128, %s17, [#allocation3]
    $region5: #{tpu_custom_call.1} parent=1 // pred_fallthru
      _
    // Predicated region
    $region6: #{tpu_custom_call.1} parent=1 // pred_check
      _
    $region7: #{tpu_custom_call.1} parent=1 // pred_check_branch
      %21 = sbr.rel (0) target = $region9
    $region8: #{tpu_custom_call.1} parent=1 // pred_region
      %s23 = ssub.s32 128, 128
      %24 = vsyncadd [#allocation6], %s23
      %s26 = sshll.u32 [#allocation5], 4
      %s27 = int_to_ptr.vmem [resolvable:$true] %s26
      %29 = dma.hbm_to_vmem [thread:$0]  %s1, 128, %s27, [#allocation6]
    $region9: #{tpu_custom_call.1} parent=1 // pred_fallthru
      _
    // Predicated region
    $region10: #{tpu_custom_call.1} parent=1 // pred_check
      _
    $region11: #{tpu_custom_call.1} parent=1 // pred_check_branch
      %31 = sbr.rel (0) target = $region13
    $region12: #{tpu_custom_call.1} parent=1 // pred_region
      %32 = dma.done [#allocation3], 128
    $region13: #{tpu_custom_call.1} parent=1 // pred_fallthru
      _
    // Predicated region
    $region14: #{tpu_custom_call.1} parent=1 // pred_check
      _
    $region15: #{tpu_custom_call.1} parent=1 // pred_check_branch
      %34 = sbr.rel (0) target = $region17
    $region16: #{tpu_custom_call.1} parent=1 // pred_region
      %35 = dma.done [#allocation6], 128
    $region17: #{tpu_custom_call.1} parent=1 // pred_fallthru
      _
    %v36 = vld [vmem:[#allocation2] sm:$0xff]
    %v37 = vmul.f32 %v36, 0.5
    %v38 = vld [vmem:[#allocation5] sm:$0xff]
    %v39 = vmul.f32 %v38, 0.5
    %s40 = smul.u32 0, 8
    %v41 = vlaneseq
    %v42 = vshrl.u32 %v41, 7
    %v43 = vstv %s40
    %v44 = vadd.s32 %v43, %v42
    %vm45 = vcmp.lt.s32.totalorder %v44, 8
    %v46 = vsel %vm45, 1, 0
    %vm47 = vcmp.eq.s32.totalorder %v46, 1
    %v48 = vsel %vm47, %v37, 0.0
    %v49 = vsel %vm47, %v39, 0.0
    %vm50 = vcmask 130048
    %v51 = vsel %vm50, %v48, -inf
    %52 = vmax.xlane.f32.xlu0 %v51
    %v53 = vpop.xlane.xlu0 %52
    %v54 = vsub.f32 %v48, %v53
    %v55 = vmul.f32 %v54, 1.442695
    %v56 = vpow.pop %v55
    %v57 = vsel %vm50, %v56, 0.0
    %58 = vadd.xlane.f32.xlu0 %v57
    %v59 = vpop.xlane.xlu0 %58
    %v60 = vlog2.pop %v59
    %v61 = vmul.f32 %v60, 0.6931472
    %v62 = vsub.f32 %v54, %v61
    %v63 = vsel %vm50, %v49, -inf
    %64 = vmax.xlane.f32.xlu0 %v63
    %v65 = vpop.xlane.xlu0 %64
    %v66 = vsub.f32 %v49, %v65
    %v67 = vmul.f32 %v66, 1.442695
    %v68 = vpow.pop %v67
    %v69 = vsel %vm50, %v68, 0.0
    %70 = vadd.xlane.f32.xlu0 %v69
    %v71 = vpop.xlane.xlu0 %70
    %v72 = vlog2.pop %v71
    %v73 = vmul.f32 %v72, 0.6931472
    %v74 = vsub.f32 %v66, %v73
    %v75 = vsub.f32 %v74, %v62
    %v76 = vmul.f32 %v68, %v75
    %v77 = vsel %vm50, %v76, 0.0
    %78 = vadd.xlane.f32.xlu0 %v77
    %v79 = vpop.xlane.xlu0 %78
    %v80 = vrcp.pop %v71
    %v81 = vmul.f32 %v79, %v80
    %vm82 = vcmask 7168
    %v83 = vsel %vm82, %v81, 0.0
    %84 = vadd.xlane.f32.xlu0 %v83
    %v85 = vpop.xlane.xlu0 %84
    %v86 = vrot.slane %v85, 4
    %v87 = vadd.f32 %v85, %v86
    %v88 = vrot.slane %v87, 2
    %v89 = vadd.f32 %v87, %v88
    %v90 = vrot.slane %v89, 1
    %v91 = vadd.f32 %v89, %v90
    %s92 = vtos %v91
    %s93 = scalar_lea.smem [#allocation7], 0
    %94 = sst [smem:[%s93]] %s92
    // Predicated region
    $region18: #{tpu_custom_call.1} parent=1 // pred_check
      _
    $region19: #{tpu_custom_call.1} parent=1 // pred_check_branch
      %96 = sbr.rel (0) target = $region21
    $region20: #{tpu_custom_call.1} parent=1 // pred_region
      %s98 = ssub.s32 16, 16
      %99 = vsyncadd [#allocation4], %s98
      %102 = dma.smem_to_hbm [#allocation7], 16, %s2, [#allocation4]
    $region21: #{tpu_custom_call.1} parent=1 // pred_fallthru
      _
    // Predicated region
    $region22: #{tpu_custom_call.1} parent=1 // pred_check
      _
    $region23: #{tpu_custom_call.1} parent=1 // pred_check_branch
      %104 = sbr.rel (0) target = $region25
    $region24: #{tpu_custom_call.1} parent=1 // pred_region
      %105 = dma.done [#allocation4], 16
    $region25: #{tpu_custom_call.1} parent=1 // pred_fallthru
      _
    %106 = sfence
    %107 = vsyncpa [#allocation3], 1
    %108 = vsyncpa [#allocation6], 1
    %109 = vsyncpa [#allocation4], 1

</llo_original>
